<compile_context>
chip_gen: v7x
topology: tpu7x:2x2x1
jax: 0.10.0
libtpu: 0.0.40
codegen_flags: <defaults>
</compile_context>

<pallas_src>
import functools

import numpy as np

import jax
import jax.numpy as jnp
from jax.experimental import pallas as pl
from jax.experimental.pallas import tpu as pltpu


def _round_up(n, m):
    return ((n + m - 1) // m) * m


# ----------------------------------------------------------------------------
# Kernel
# ----------------------------------------------------------------------------
def _decoder_kernel(n_rest, x_ref, w0_ref, b0_ref, wr_ref, br_ref, out_ref):
    """Fused Decoder forward for one batch tile.

    x_ref   : (TB, IN_PAD)        bf16  input tile (true feature width, padded
                                        only to a multiple of 16 lanes)
    w0_ref  : (IN_PAD, P)         bf16  first MLP layer weight (resident)
    b0_ref  : (1, P)              f32   first MLP layer bias   (resident)
    wr_ref  : (n_rest, P, P)      bf16  remaining MLP layers + fused mu|log_var
                                        head, stacked (resident)
    br_ref  : (n_rest, 1, P)      f32   corresponding biases (resident)
    out_ref : (TB, P)             bf16  fused head output: [mu | log_var | 0..]
    """
    # First MLP layer: bf16 MXU operands, f32 accumulation, f32 bias + tanh
    # (v5e has no bf16 VPU/EUP).
    h = jnp.tanh(
        jnp.dot(x_ref[...], w0_ref[...], preferred_element_type=jnp.float32)
        + b0_ref[...])

    # Remaining MLP layers (Linear + Tanh).
    for l in range(n_rest - 1):
        z = jnp.dot(h.astype(jnp.bfloat16), wr_ref[l, :, :],
                    preferred_element_type=jnp.float32) + br_ref[l, :, :]
        h = jnp.tanh(z)

    # Fused mu|log_var head: single matmul, single lane-dense (TB, 128) store.
    out = jnp.dot(h.astype(jnp.bfloat16), wr_ref[n_rest - 1, :, :],
                  preferred_element_type=jnp.float32) + br_ref[n_rest - 1, :, :]
    out_ref[...] = out.astype(out_ref.dtype)


# ----------------------------------------------------------------------------
# One-time parameter packing (hoisted out of the forward path)
# ----------------------------------------------------------------------------
def pack_decoder_params(mlp_params, head_params, latent_size):
    """Pack / pad / stack all Decoder parameters once (host-side numpy).

    mlp_params  : list of (W_i, b_i) with W_i (in, out), b_i (1, out) or (out,)
    head_params : ((W_mu, b_mu), (W_lv, b_lv)) for the mu / log_var heads
    Returns a dict of device arrays + static metadata used by decoder_forward.
    """
    assert len(mlp_params) >= 1, "Decoder needs at least one MLP layer"

    (w_mu, b_mu), (w_lv, b_lv) = head_params
    w_head = np.concatenate([np.asarray(w_mu), np.asarray(w_lv)], axis=1)
    b_head = np.concatenate([np.asarray(b_mu).reshape(-1),
                             np.asarray(b_lv).reshape(-1)], axis=0)

    ws = [np.asarray(w, np.float32) for (w, _) in mlp_params] + [w_head.astype(np.float32)]
    bs = [np.asarray(b, np.float32).reshape(-1) for (_, b) in mlp_params] + \
         [b_head.astype(np.float32)]

    in_features = ws[0].shape[0]
    in_pad = _round_up(in_features, 16)                    # bf16 sublane packing

    # Uniform 128-aligned width for the hidden/head dims so every matmul is a
    # clean MXU tile and the output store is lane-dense. (Do NOT bump to 256.)
    dims = [ws[0].shape[1]]
    for w in ws[1:]:
        dims.extend([w.shape[0], w.shape[1]])
    P = _round_up(max(dims), 128)

    # First layer kept separate so x can stay at its true (narrow) lane width.
    w0 = np.zeros((in_pad, P), np.float32)
    w0[:ws[0].shape[0], :ws[0].shape[1]] = ws[0]
    b0 = np.zeros((1, P), np.float32)
    b0[0, :bs[0].shape[0]] = bs[0]

    # Remaining MLP layers + fused mu|log_var head, stacked.
    n_rest = len(ws) - 1
    w_rest = np.zeros((n_rest, P, P), np.float32)
    b_rest = np.zeros((n_rest, 1, P), np.float32)
    for i, (w, b) in enumerate(zip(ws[1:], bs[1:])):
        w_rest[i, :w.shape[0], :w.shape[1]] = w
        b_rest[i, 0, :b.shape[0]] = b

    return {
        # kernel operands
        "w0": jnp.asarray(w0, jnp.bfloat16),
        "b0": jnp.asarray(b0, jnp.float32),
        "w_rest": jnp.asarray(w_rest, jnp.bfloat16),
        "b_rest": jnp.asarray(b_rest, jnp.float32),
        # static metadata
        "in_features": in_features,
        "in_pad": in_pad,
        "P": P,
        "n_rest": n_rest,
        "latent_size": latent_size,
        # unpadded f32 params for the small-batch fast path
        "mlp_params": tuple((jnp.asarray(w, jnp.float32),
                             jnp.asarray(b, jnp.float32).reshape(1, -1))
                            for (w, b) in mlp_params),
        "head_params": ((jnp.asarray(w_mu, jnp.float32),
                         jnp.asarray(b_mu, jnp.float32).reshape(1, -1)),
                        (jnp.asarray(w_lv, jnp.float32),
                         jnp.asarray(b_lv, jnp.float32).reshape(1, -1))),
    }


# ----------------------------------------------------------------------------
# Forward pass
# ----------------------------------------------------------------------------
def decoder_forward(x, packed, *, block_batch=1024, min_pallas_batch=128):
    """Decoder forward pass. Returns (mu_theta, log_var_theta) as f32.

    x      : (batch, layer_sizes[0]) float array
    packed : output of pack_decoder_params (packing hoisted out of this path)
    """
    batch = x.shape[0]
    latent = packed["latent_size"]

    # Small-batch fast path: the pallas launch + padded 16-row tiles are pure
    # overhead for tiny batches; let XLA fuse the three small GEMMs instead.
    if batch < min_pallas_batch:
        h = x.astype(jnp.float32)
        for w, b in packed["mlp_params"]:
            h = jnp.tanh(h @ w + b)
        (w_mu, b_mu), (w_lv, b_lv) = packed["head_params"]
        return h @ w_mu + b_mu, h @ w_lv + b_lv

    in_features = packed["in_features"]
    in_pad = packed["in_pad"]
    P = packed["P"]
    n_rest = packed["n_rest"]

    # --- batch tiling --------------------------------------------------------
    # tb must be a multiple of 16 (bf16 x tile). For mid-size batches pick a
    # tile that yields >= 2 grid blocks so both v7x TensorCores get work; cap
    # the tile at block_batch to amortize per-step overhead at large batch.
    tb_align = 16
    block_batch = max(tb_align, (block_batch // tb_align) * tb_align)
    batch_pad0 = _round_up(batch, tb_align)
    if batch_pad0 >= 2 * tb_align:
        tb = min(block_batch, _round_up(pl.cdiv(batch_pad0, 2), tb_align))
    else:
        tb = batch_pad0
    batch_pad = _round_up(batch, tb)
    n_blocks = batch_pad // tb

    # Per-call input prep: cast to bf16 and zero-pad rows/lanes (cheap).
    x_p = jnp.pad(x.astype(jnp.bfloat16),
                  ((0, batch_pad - batch), (0, in_pad - in_features)))

    kernel = functools.partial(_decoder_kernel, n_rest)

    out = pl.pallas_call(
        kernel,
        out_shape=jax.ShapeDtypeStruct((batch_pad, P), jnp.bfloat16),
        grid=(n_blocks,),
        in_specs=[
            pl.BlockSpec((tb, in_pad), lambda i: (i, 0)),         # x tile (bf16)
            pl.BlockSpec((in_pad, P), lambda i: (0, 0)),          # resident w0
            pl.BlockSpec((1, P), lambda i: (0, 0)),               # resident b0
            pl.BlockSpec((n_rest, P, P), lambda i: (0, 0, 0)),    # resident W stack
            pl.BlockSpec((n_rest, 1, P), lambda i: (0, 0, 0)),    # resident b stack
        ],
        out_specs=pl.BlockSpec((tb, P), lambda i: (i, 0)),        # lane-dense slab
        compiler_params=pltpu.CompilerParams(
            dimension_semantics=("parallel",),     # megacore-shard batch (v7x)
            vmem_limit_bytes=32 * 1024 * 1024,     # safe under v7x's 64 MiB
        ),
    )(x_p, packed["w0"], packed["b0"], packed["w_rest"], packed["b_rest"])

    mu = out[:batch, :latent].astype(jnp.float32)
    log_var = out[:batch, latent:2 * latent].astype(jnp.float32)
    return mu, log_var


# ----------------------------------------------------------------------------
# Test / demo helpers
# ----------------------------------------------------------------------------
def _init_linear(key, in_size, out_size):
    """Deterministic PyTorch-style init: U(-1/sqrt(in), 1/sqrt(in))."""
    kw, kb = jax.random.split(key)
    bound = 1.0 / jnp.sqrt(jnp.float32(in_size))
    w = jax.random.uniform(kw, (in_size, out_size), jnp.float32, -bound, bound)
    b = jax.random.uniform(kb, (1, out_size), jnp.float32, -bound, bound)
    return w, b


def _reference_forward(x, mlp_params, head_params):
    """Pure-JAX f32 reference with the original module semantics."""
    h = x
    for w, b in mlp_params:
        h = jnp.tanh(h @ w + b)
    (w_mu, b_mu), (w_lv, b_lv) = head_params
    return h @ w_mu + b_mu, h @ w_lv + b_lv


if __name__ == "__main__":
    # Small shapes consistent with the module:
    #   layer_sizes = [32, 64, 32], latent_size = 16, batch = 2
    #   conditional = False (only affects an unused input_size in __init__).
    layer_sizes = [32, 64, 32]
    latent_size = 16
    batch_size = 2

    key = jax.random.PRNGKey(0)
    keys = jax.random.split(key, len(layer_sizes) + 4)

    # MLP: Linear(layer_sizes[i], layer_sizes[i+1]) + Tanh for each pair.
    mlp_params = []
    for i, (in_size, out_size) in enumerate(zip(layer_sizes[:-1], layer_sizes[1:])):
        mlp_params.append(_init_linear(keys[i], in_size, out_size))

    # Heads: linear_means / linear_log_var : layer_sizes[-1] -> latent_size.
    head_mu = _init_linear(keys[-4], layer_sizes[-1], latent_size)
    head_lv = _init_linear(keys[-3], layer_sizes[-1], latent_size)
    head_params = (head_mu, head_lv)

    # One-time parameter packing (hoisted out of the forward path).
    packed = pack_decoder_params(mlp_params, head_params, latent_size)

    # --- batch=2 demo, forced through the Pallas kernel path -----------------
    x = jax.random.normal(keys[-2], (batch_size, layer_sizes[0]), jnp.float32)
    mu, log_var = decoder_forward(x, packed, min_pallas_batch=0)
    jax.block_until_ready((mu, log_var))

    mu_ref, lv_ref = _reference_forward(x, mlp_params, head_params)
    assert mu.shape == (batch_size, latent_size)
    assert log_var.shape == (batch_size, latent_size)
    # Tolerance accounts for bf16 x / weights / output (f32 accumulation + tanh).
    assert jnp.allclose(mu, mu_ref, atol=3e-2, rtol=3e-2)
    assert jnp.allclose(log_var, lv_ref, atol=3e-2, rtol=3e-2)

    # --- batch=2 with default dispatch hits the pure-JAX fast path -----------
    mu_fast, lv_fast = decoder_forward(x, packed)
    assert jnp.allclose(mu_fast, mu_ref, atol=1e-5, rtol=1e-5)
    assert jnp.allclose(lv_fast, lv_ref, atol=1e-5, rtol=1e-5)

    # --- larger batch exercises the multi-block (both-TensorCore) grid -------
    big_batch = 512
    x_big = jax.random.normal(keys[-1], (big_batch, layer_sizes[0]), jnp.float32)
    fwd = jax.jit(lambda xb: decoder_forward(xb, packed))   # packing already hoisted
    mu_b, lv_b = fwd(x_big)
    jax.block_until_ready((mu_b, lv_b))

    mu_bref, lv_bref = _reference_forward(x_big, mlp_params, head_params)
    assert mu_b.shape == (big_batch, latent_size)
    assert lv_b.shape == (big_batch, latent_size)
    assert jnp.allclose(mu_b, mu_bref, atol=3e-2, rtol=3e-2)
    assert jnp.allclose(lv_b, lv_bref, atol=3e-2, rtol=3e-2)

    print("KERNEL_OK")
</pallas_src>

<mosaic_0001>
module attributes {stable_mosaic.version = 11 : i64} {
  func.func @_decoder_kernel(%arg0: i32, %arg1: memref<16x32xbf16, #tpu.memory_space<vmem>>, %arg2: memref<32x128xbf16, #tpu.memory_space<vmem>>, %arg3: memref<1x128xf32, #tpu.memory_space<vmem>>, %arg4: memref<2x128x128xbf16, #tpu.memory_space<vmem>>, %arg5: memref<2x1x128xf32, #tpu.memory_space<vmem>>, %arg6: memref<16x128xbf16, #tpu.memory_space<vmem>>) attributes {dimension_semantics = [#tpu.dimension_semantics<parallel>], iteration_bounds = array<i64: 1>, scalar_prefetch = 0 : i64, scratch_operands = 0 : i64, tpu.core_type = #tpu.core_type<tc>, window_params = [{transform_indices = @transform_0, window_bounds = array<i64: 16, 32>}, {pipeline_mode = #tpu.pipeline_mode<synchronous>, transform_indices = @transform_1, window_bounds = array<i64: 32, 128>}, {pipeline_mode = #tpu.pipeline_mode<synchronous>, transform_indices = @transform_2, window_bounds = array<i64: 1, 128>}, {pipeline_mode = #tpu.pipeline_mode<synchronous>, transform_indices = @transform_3, window_bounds = array<i64: 2, 128, 128>}, {pipeline_mode = #tpu.pipeline_mode<synchronous>, transform_indices = @transform_4, window_bounds = array<i64: 2, 1, 128>}, {transform_indices = @transform_5, window_bounds = array<i64: 16, 128>}]} {
    %c0 = arith.constant 0 : index
    %c0_0 = arith.constant 0 : index
    %0 = vector.load %arg1[%c0, %c0_0] : memref<16x32xbf16, #tpu.memory_space<vmem>>, vector<16x32xbf16>
    %c0_1 = arith.constant 0 : index
    %c0_2 = arith.constant 0 : index
    %1 = vector.load %arg2[%c0_1, %c0_2] : memref<32x128xbf16, #tpu.memory_space<vmem>>, vector<32x128xbf16>
    %cst = arith.constant dense<0.000000e+00> : vector<16x128xf32>
    %2 = tpu.matmul %0, %1, %cst {dimension_numbers = #tpu.dot_dimension_numbers<[1], [0], [0], [1], [0, 0, 1, 1], [], []>} : vector<16x32xbf16>, vector<32x128xbf16>, vector<16x128xf32> -> vector<16x128xf32>
    %c0_3 = arith.constant 0 : index
    %c0_4 = arith.constant 0 : index
    %3 = vector.load %arg3[%c0_3, %c0_4] : memref<1x128xf32, #tpu.memory_space<vmem>>, vector<1x128xf32>
    %4 = vector.broadcast %3 : vector<1x128xf32> to vector<16x128xf32>
    %5 = arith.addf %2, %4 : vector<16x128xf32>
    %6 = math.tanh %5 : vector<16x128xf32>
    %7 = arith.truncf %6 : vector<16x128xf32> to vector<16x128xbf16>
    %c0_5 = arith.constant 0 : index
    %c0_6 = arith.constant 0 : index
    %c0_7 = arith.constant 0 : index
    %8 = vector.load %arg4[%c0_5, %c0_6, %c0_7] : memref<2x128x128xbf16, #tpu.memory_space<vmem>>, vector<1x128x128xbf16>
    %9 = vector.shape_cast %8 : vector<1x128x128xbf16> to vector<128x128xbf16>
    %cst_8 = arith.constant dense<0.000000e+00> : vector<16x128xf32>
    %10 = tpu.matmul %7, %9, %cst_8 {dimension_numbers = #tpu.dot_dimension_numbers<[1], [0], [0], [1], [0, 0, 1, 1], [], []>} : vector<16x128xbf16>, vector<128x128xbf16>, vector<16x128xf32> -> vector<16x128xf32>
    %c0_9 = arith.constant 0 : index
    %c0_10 = arith.constant 0 : index
    %c0_11 = arith.constant 0 : index
    %11 = vector.load %arg5[%c0_9, %c0_10, %c0_11] : memref<2x1x128xf32, #tpu.memory_space<vmem>>, vector<1x1x128xf32>
    %12 = vector.shape_cast %11 : vector<1x1x128xf32> to vector<1x128xf32>
    %13 = vector.broadcast %12 : vector<1x128xf32> to vector<16x128xf32>
    %14 = arith.addf %10, %13 : vector<16x128xf32>
    %15 = math.tanh %14 : vector<16x128xf32>
    %16 = arith.truncf %15 : vector<16x128xf32> to vector<16x128xbf16>
    %c1 = arith.constant 1 : index
    %c0_12 = arith.constant 0 : index
    %c0_13 = arith.constant 0 : index
    %17 = vector.load %arg4[%c1, %c0_12, %c0_13] : memref<2x128x128xbf16, #tpu.memory_space<vmem>>, vector<1x128x128xbf16>
    %18 = vector.shape_cast %17 : vector<1x128x128xbf16> to vector<128x128xbf16>
    %cst_14 = arith.constant dense<0.000000e+00> : vector<16x128xf32>
    %19 = tpu.matmul %16, %18, %cst_14 {dimension_numbers = #tpu.dot_dimension_numbers<[1], [0], [0], [1], [0, 0, 1, 1], [], []>} : vector<16x128xbf16>, vector<128x128xbf16>, vector<16x128xf32> -> vector<16x128xf32>
    %c1_15 = arith.constant 1 : index
    %c0_16 = arith.constant 0 : index
    %c0_17 = arith.constant 0 : index
    %20 = vector.load %arg5[%c1_15, %c0_16, %c0_17] : memref<2x1x128xf32, #tpu.memory_space<vmem>>, vector<1x1x128xf32>
    %21 = vector.shape_cast %20 : vector<1x1x128xf32> to vector<1x128xf32>
    %22 = vector.broadcast %21 : vector<1x128xf32> to vector<16x128xf32>
    %23 = arith.addf %19, %22 : vector<16x128xf32>
    %24 = arith.truncf %23 : vector<16x128xf32> to vector<16x128xbf16>
    %c0_18 = arith.constant 0 : index
    %c0_19 = arith.constant 0 : index
    %25 = vector.load %arg6[%c0_18, %c0_19] : memref<16x128xbf16, #tpu.memory_space<vmem>>, vector<16x128xbf16>
    tpu.vector_store %arg6[%c0_18, %c0_19], %24 {strides = array<i32>} : memref<16x128xbf16, #tpu.memory_space<vmem>>, vector<16x128xbf16>,
    return
  }
  func.func @transform_0(%arg0: i32) -> (i32, i32) {
    %c0_i32 = arith.constant 0 : i32
    %c0_i32_0 = arith.constant 0 : i32
    return %arg0, %c0_i32 : i32, i32
  }
  func.func @transform_1(%arg0: i32) -> (i32, i32) {
    %c0_i32 = arith.constant 0 : i32
    %c0_i32_0 = arith.constant 0 : i32
    %c0_i32_1 = arith.constant 0 : i32
    return %c0_i32, %c0_i32_0 : i32, i32
  }
  func.func @transform_2(%arg0: i32) -> (i32, i32) {
    %c0_i32 = arith.constant 0 : i32
    %c0_i32_0 = arith.constant 0 : i32
    %c0_i32_1 = arith.constant 0 : i32
    return %c0_i32, %c0_i32_0 : i32, i32
  }
  func.func @transform_3(%arg0: i32) -> (i32, i32, i32) {
    %c0_i32 = arith.constant 0 : i32
    %c0_i32_0 = arith.constant 0 : i32
    %c0_i32_1 = arith.constant 0 : i32
    %c0_i32_2 = arith.constant 0 : i32
    return %c0_i32, %c0_i32_0, %c0_i32_1 : i32, i32, i32
  }
  func.func @transform_4(%arg0: i32) -> (i32, i32, i32) {
    %c0_i32 = arith.constant 0 : i32
    %c0_i32_0 = arith.constant 0 : i32
    %c0_i32_1 = arith.constant 0 : i32
    %c0_i32_2 = arith.constant 0 : i32
    return %c0_i32, %c0_i32_0, %c0_i32_1 : i32, i32, i32
  }
  func.func @transform_5(%arg0: i32) -> (i32, i32) {
    %c0_i32 = arith.constant 0 : i32
    %c0_i32_0 = arith.constant 0 : i32
    return %arg0, %c0_i32 : i32, i32
  }
}

</mosaic_0001>

<llo_original>
// kernel: tpu_custom_call.1
$region0: #{tpu_custom_call.1}
  #allocation0 [shape = 'u32[]', space=smem, size = 0x4, offset = 0x4, fixed_abs, tag = 'smem constant byte address 0x4 - core index']
  #allocation1 [shape = 'u32[144,128]{1,0:T(1,128)}', space=vmem, size = 0x12000, scoped, tag = 'internal scratch']
  %s0 = inlined_call_operand.hbm [shape: bf16[16,32], index: 0, kind: input, shape index: {}]
  %s1 = inlined_call_operand.hbm [shape: bf16[32,128], index: 1, kind: input, shape index: {}]
  %s2 = inlined_call_operand.vmem [shape: f32[1,128], index: 2, kind: input, shape index: {}]
  %s3 = inlined_call_operand.hbm [shape: bf16[2,128,128], index: 3, kind: input, shape index: {}]
  %s4 = inlined_call_operand.vmem [shape: f32[2,1,128], index: 4, kind: input, shape index: {}]
  %s5 = inlined_call_operand.hbm [shape: bf16[16,128], index: 5, kind: output, shape index: {}]
  %s6 = sld [smem:[#allocation0]]
  $region42: #{tpu_custom_call.1} parent=0
    _
  %s8 = ssub.s32 1, %s6
  %s9 = scalar_select 0, %s8, %s6
  $region1: #{tpu_custom_call.1} parent=0
    #allocation2 [shape = 'u8[4096]{0}', space=vmem, size = 0x1000, scoped, tag = 'input window, operand 0, single buffered']
    #allocation3 [shape = 's32[1]{0}', space=sflag, size = 0x4, scoped, tag = 'scoped memory for tpu_custom_call.1']
    #allocation4 [shape = 's32[1]{0}', space=sflag, size = 0x4, scoped, tag = 'scoped memory for tpu_custom_call.1']
    #allocation5 [shape = 'u8[8192]{0}', space=vmem, size = 0x2000, scoped, tag = 'input window, operand 1, single buffered']
    #allocation6 [shape = 's32[1]{0}', space=sflag, size = 0x4, scoped, tag = 'scoped memory for tpu_custom_call.1']
    #allocation7 [shape = 'u8[65536]{0}', space=vmem, size = 0x10000, scoped, tag = 'input window, operand 3, single buffered']
    #allocation8 [shape = 'u8[4096]{0}', space=vmem, size = 0x1000, scoped, tag = 'output window, operand 0, single buffered']
    %10 = vsyncpa [#allocation3], 0
    %11 = vsyncpa [#allocation6], 0
    %12 = vsyncpa [#allocation4], 0
    // Predicated region
    $region2: #{tpu_custom_call.1} parent=1 // pred_check
      _
    $region3: #{tpu_custom_call.1} parent=1 // pred_check_branch
      %14 = sbr.rel (0) target = $region5
    $region4: #{tpu_custom_call.1} parent=1 // pred_region
      %s16 = ssub.s32 128, 128
      %17 = vsyncadd [#allocation3], %s16
      %s18 = sshll.u32 [#allocation2], 4
      %s19 = int_to_ptr.vmem [resolvable:$true] %s18
      %24 = dma.hbm_to_vmem [thread:$0]  %s0, 128, %s19, [#allocation3], 64, 64, 4
    $region5: #{tpu_custom_call.1} parent=1 // pred_fallthru
      _
    // Predicated region
    $region6: #{tpu_custom_call.1} parent=1 // pred_check
      _
    $region7: #{tpu_custom_call.1} parent=1 // pred_check_branch
      %26 = sbr.rel (0) target = $region9
    $region8: #{tpu_custom_call.1} parent=1 // pred_region
      %s28 = ssub.s32 256, 256
      %29 = vsyncadd [#allocation6], %s28
      %s30 = sshll.u32 [#allocation5], 4
      %s31 = int_to_ptr.vmem [resolvable:$true] %s30
      %36 = dma.hbm_to_vmem [thread:$0]  %s1, 256, %s31, [#allocation6], 64, 64, 4
    $region9: #{tpu_custom_call.1} parent=1 // pred_fallthru
      _
    // Predicated region
    $region10: #{tpu_custom_call.1} parent=1 // pred_check
      _
    $region11: #{tpu_custom_call.1} parent=1 // pred_check_branch
      %38 = sbr.rel (0) target = $region13
    $region12: #{tpu_custom_call.1} parent=1 // pred_region
      _
    $region13: #{tpu_custom_call.1} parent=1 // pred_fallthru
      _
    // Predicated region
    $region14: #{tpu_custom_call.1} parent=1 // pred_check
      _
    $region15: #{tpu_custom_call.1} parent=1 // pred_check_branch
      %40 = sbr.rel (0) target = $region17
    $region16: #{tpu_custom_call.1} parent=1 // pred_region
      %s42 = ssub.s32 2048, 2048
      %43 = vsyncadd [#allocation6], %s42
      %s44 = sshll.u32 [#allocation7], 4
      %s45 = int_to_ptr.vmem [resolvable:$true] %s44
      %50 = dma.hbm_to_vmem [thread:$0]  %s3, 2048, %s45, [#allocation6], 64, 64, 4
    $region17: #{tpu_custom_call.1} parent=1 // pred_fallthru
      _
    // Predicated region
    $region18: #{tpu_custom_call.1} parent=1 // pred_check
      _
    $region19: #{tpu_custom_call.1} parent=1 // pred_check_branch
      %52 = sbr.rel (0) target = $region21
    $region20: #{tpu_custom_call.1} parent=1 // pred_region
      _
    $region21: #{tpu_custom_call.1} parent=1 // pred_fallthru
      _
    // Predicated region
    $region22: #{tpu_custom_call.1} parent=1 // pred_check
      _
    $region23: #{tpu_custom_call.1} parent=1 // pred_check_branch
      %54 = sbr.rel (0) target = $region25
    $region24: #{tpu_custom_call.1} parent=1 // pred_region
      %55 = dma.done [#allocation3], 128
    $region25: #{tpu_custom_call.1} parent=1 // pred_fallthru
      _
    // Predicated region
    $region26: #{tpu_custom_call.1} parent=1 // pred_check
      _
    $region27: #{tpu_custom_call.1} parent=1 // pred_check_branch
      %57 = sbr.rel (0) target = $region29
    $region28: #{tpu_custom_call.1} parent=1 // pred_region
      %58 = dma.done [#allocation6], 256
    $region29: #{tpu_custom_call.1} parent=1 // pred_fallthru
      _
    // Predicated region
    $region30: #{tpu_custom_call.1} parent=1 // pred_check
      _
    $region31: #{tpu_custom_call.1} parent=1 // pred_check_branch
      %60 = sbr.rel (0) target = $region33
    $region32: #{tpu_custom_call.1} parent=1 // pred_region
      %61 = dma.done [#allocation6], 2048
    $region33: #{tpu_custom_call.1} parent=1 // pred_fallthru
      _
    %v63 = vld [vmem:[#allocation2] sm:$0xf]
    %v64 = vld [vmem:[#allocation2 + $0x4] sm:$0xf]
    %v65 = vld [vmem:[#allocation5] sm:$0xf]
    %v66 = vld [vmem:[#allocation5 + $0x4] sm:$0xf]
    %v67 = vld [vmem:[#allocation5 + $0x8] sm:$0xf]
    %v68 = vld [vmem:[#allocation5 + $0xc] sm:$0xf]
    %v69 = vld [vmem:[%s2] sm:$0x1]
    %v71 = vlaneseq
    %v72 = vshrl.u32 %v71, 7
    %v73 = vsub.s32 0, %v72
    %v74 = vrot.slane %v69, %v73
    %v78 = vunpack.c.l.b16 %v63
    %v79 = vunpack.c.l.b16 %v64
    %v80 = vpack.c.b16 %v79, %v78
    %v85 = vunpack.c.l.b16 %v65
    %v86 = vunpack.c.l.b16 %v66
    %v87 = vunpack.c.l.b16 %v67
    %v88 = vunpack.c.l.b16 %v68
    %v89 = vpack.c.b16 %v86, %v85
    %v90 = vpack.c.b16 %v88, %v87
    %vm93 = vcmask 261120
    %v95 = vsel %vm93, %v80, 0
    %97 = vmatprep.subr.bf16.mxu0 0
    %98 = vmatpush1.bf16.msra.mxu0 %v89
    %99 = vmatprep.subr.bf16.mxu0 0
    %100 = vmatpush1.bf16.msra.mxu0 %v90
    %101 = vmatprep.subr.bf16.mxu0 0
    %102 = vmatpush1.bf16.msra.mxu0 0
    %103 = vmatprep.subr.bf16.mxu0 0
    %104 = vmatpush1.bf16.msra.mxu0 0
    %105 = vmatprep.subr.bf16.mxu0 0
    %106 = vmatpush1.bf16.msra.mxu0 0
    %107 = vmatprep.subr.bf16.mxu0 0
    %108 = vmatpush1.bf16.msra.mxu0 0
    %109 = vmatprep.subr.bf16.mxu0 0
    %110 = vmatpush1.bf16.msra.mxu0 0
    %111 = vmatprep.subr.bf16.mxu0 0
    %112 = vmatpush1.bf16.msra.mxu0 0
    %113 = vmatprep.subr.bf16.mxu0 0
    %114 = vmatpush1.bf16.msra.mxu0 0
    %115 = vmatprep.subr.bf16.mxu0 0
    %116 = vmatpush1.bf16.msra.mxu0 0
    %117 = vmatprep.subr.bf16.mxu0 0
    %118 = vmatpush1.bf16.msra.mxu0 0
    %119 = vmatprep.subr.bf16.mxu0 0
    %120 = vmatpush1.bf16.msra.mxu0 0
    %121 = vmatprep.subr.bf16.mxu0 0
    %122 = vmatpush1.bf16.msra.mxu0 0
    %123 = vmatprep.subr.bf16.mxu0 0
    %124 = vmatpush1.bf16.msra.mxu0 0
    %125 = vmatprep.subr.bf16.mxu0 0
    %126 = vmatpush1.bf16.msra.mxu0 0
    %127 = vmatprep.subr.bf16.mxu0 0
    %128 = vmatpush1.bf16.msra.mxu0 0
    %129 = vmatprep.mubr.bf16.mxu0 0
    %130 = vmatmul.mubr.bf16.gmra.mrb[0].mxu0 %v95
    %v131 = vpop.f32.mrb[0].mxu0
    %v132 = vadd.f32 %v74, %v131
    %v133 = vpop.f32.mrb[0].mxu0
    %v134 = vpop.f32.mrb[0].mxu0
    %v135 = vadd.f32 %v74, %v134
    %v136 = vpop.f32.mrb[0].mxu0
    %137 = vdwg.mxu0
    %v138 = vtanh.pop %v132
    %v139 = vtanh.pop %v135
    %v140 = vpack.c.bf16 %v139, %v138
    %v141 = vld [vmem:[#allocation7] sm:$0xf]
    %v142 = vld [vmem:[#allocation7 + $0x4] sm:$0xf]
    %v143 = vld [vmem:[#allocation7 + $0x8] sm:$0xf]
    %v144 = vld [vmem:[#allocation7 + $0xc] sm:$0xf]
    %v145 = vld [vmem:[#allocation7 + $0x10] sm:$0xf]
    %v146 = vld [vmem:[#allocation7 + $0x14] sm:$0xf]
    %v147 = vld [vmem:[#allocation7 + $0x18] sm:$0xf]
    %v148 = vld [vmem:[#allocation7 + $0x1c] sm:$0xf]
    %v149 = vld [vmem:[#allocation7 + $0x20] sm:$0xf]
    %v150 = vld [vmem:[#allocation7 + $0x24] sm:$0xf]
    %v151 = vld [vmem:[#allocation7 + $0x28] sm:$0xf]
    %v152 = vld [vmem:[#allocation7 + $0x2c] sm:$0xf]
    %v153 = vld [vmem:[#allocation7 + $0x30] sm:$0xf]
    %v154 = vld [vmem:[#allocation7 + $0x34] sm:$0xf]
    %v155 = vld [vmem:[#allocation7 + $0x38] sm:$0xf]
    %v156 = vld [vmem:[#allocation7 + $0x3c] sm:$0xf]
    %v157 = vld [vmem:[%s4] sm:$0x1]
    %v159 = vlaneseq
    %v160 = vshrl.u32 %v159, 7
    %v161 = vsub.s32 0, %v160
    %v162 = vrot.slane %v157, %v161
    %v180 = vunpack.c.l.b16 %v141
    %v181 = vunpack.c.l.b16 %v142
    %v182 = vunpack.c.l.b16 %v143
    %v183 = vunpack.c.l.b16 %v144
    %v184 = vunpack.c.l.b16 %v145
    %v185 = vunpack.c.l.b16 %v146
    %v186 = vunpack.c.l.b16 %v147
    %v187 = vunpack.c.l.b16 %v148
    %v188 = vunpack.c.l.b16 %v149
    %v189 = vunpack.c.l.b16 %v150
    %v190 = vunpack.c.l.b16 %v151
    %v191 = vunpack.c.l.b16 %v152
    %v192 = vunpack.c.l.b16 %v153
    %v193 = vunpack.c.l.b16 %v154
    %v194 = vunpack.c.l.b16 %v155
    %v195 = vunpack.c.l.b16 %v156
    %v196 = vpack.c.b16 %v181, %v180
    %v197 = vpack.c.b16 %v183, %v182
    %v198 = vpack.c.b16 %v185, %v184
    %v199 = vpack.c.b16 %v187, %v186
    %v200 = vpack.c.b16 %v189, %v188
    %v201 = vpack.c.b16 %v191, %v190
    %v202 = vpack.c.b16 %v193, %v192
    %v203 = vpack.c.b16 %v195, %v194
    %212 = vmatprep.subr.bf16.mxu0 0
    %213 = vmatpush1.bf16.msra.mxu0 %v196
    %214 = vmatprep.subr.bf16.mxu0 0
    %215 = vmatpush1.bf16.msra.mxu0 %v197
    %216 = vmatprep.subr.bf16.mxu0 0
    %217 = vmatpush1.bf16.msra.mxu0 %v198
    %218 = vmatprep.subr.bf16.mxu0 0
    %219 = vmatpush1.bf16.msra.mxu0 %v199
    %220 = vmatprep.subr.bf16.mxu0 0
    %221 = vmatpush1.bf16.msra.mxu0 %v200
    %222 = vmatprep.subr.bf16.mxu0 0
    %223 = vmatpush1.bf16.msra.mxu0 %v201
    %224 = vmatprep.subr.bf16.mxu0 0
    %225 = vmatpush1.bf16.msra.mxu0 %v202
    %226 = vmatprep.subr.bf16.mxu0 0
    %227 = vmatpush1.bf16.msra.mxu0 %v203
    %228 = vmatprep.subr.bf16.mxu0 0
    %229 = vmatpush1.bf16.msra.mxu0 0
    %230 = vmatprep.subr.bf16.mxu0 0
    %231 = vmatpush1.bf16.msra.mxu0 0
    %232 = vmatprep.subr.bf16.mxu0 0
    %233 = vmatpush1.bf16.msra.mxu0 0
    %234 = vmatprep.subr.bf16.mxu0 0
    %235 = vmatpush1.bf16.msra.mxu0 0
    %236 = vmatprep.subr.bf16.mxu0 0
    %237 = vmatpush1.bf16.msra.mxu0 0
    %238 = vmatprep.subr.bf16.mxu0 0
    %239 = vmatpush1.bf16.msra.mxu0 0
    %240 = vmatprep.subr.bf16.mxu0 0
    %241 = vmatpush1.bf16.msra.mxu0 0
    %242 = vmatprep.subr.bf16.mxu0 0
    %243 = vmatpush1.bf16.msra.mxu0 0
    %244 = vmatprep.mubr.bf16.mxu0 0
    %245 = vmatmul.mubr.bf16.gmra.mrb[0].mxu0 %v140
    %v246 = vpop.f32.mrb[0].mxu0
    %v247 = vadd.f32 %v162, %v246
    %v248 = vpop.f32.mrb[0].mxu0
    %v249 = vpop.f32.mrb[0].mxu0
    %v250 = vadd.f32 %v162, %v249
    %v251 = vpop.f32.mrb[0].mxu0
    %252 = vdwg.mxu0
    %v253 = vtanh.pop %v247
    %v254 = vtanh.pop %v250
    %v255 = vpack.c.bf16 %v254, %v253
    %s256 = scalar_lea.vmem [#allocation7], 64
    %v257 = vld [vmem:[%s256] sm:$0xf]
    %v258 = vld [vmem:[%s256 + $0x4] sm:$0xf]
    %v259 = vld [vmem:[%s256 + $0x8] sm:$0xf]
    %v260 = vld [vmem:[%s256 + $0xc] sm:$0xf]
    %v261 = vld [vmem:[%s256 + $0x10] sm:$0xf]
    %v262 = vld [vmem:[%s256 + $0x14] sm:$0xf]
    %v263 = vld [vmem:[%s256 + $0x18] sm:$0xf]
    %v264 = vld [vmem:[%s256 + $0x1c] sm:$0xf]
    %v265 = vld [vmem:[%s256 + $0x20] sm:$0xf]
    %v266 = vld [vmem:[%s256 + $0x24] sm:$0xf]
    %v267 = vld [vmem:[%s256 + $0x28] sm:$0xf]
    %v268 = vld [vmem:[%s256 + $0x2c] sm:$0xf]
    %v269 = vld [vmem:[%s256 + $0x30] sm:$0xf]
    %v270 = vld [vmem:[%s256 + $0x34] sm:$0xf]
    %v271 = vld [vmem:[%s256 + $0x38] sm:$0xf]
    %v272 = vld [vmem:[%s256 + $0x3c] sm:$0xf]
    %s273 = scalar_lea.vmem %s4, 1
    %v274 = vld [vmem:[%s273] sm:$0x1]
    %v276 = vlaneseq
    %v277 = vshrl.u32 %v276, 7
    %v278 = vsub.s32 0, %v277
    %v279 = vrot.slane %v274, %v278
    %v297 = vunpack.c.l.b16 %v257
    %v298 = vunpack.c.l.b16 %v258
    %v299 = vunpack.c.l.b16 %v259
    %v300 = vunpack.c.l.b16 %v260
    %v301 = vunpack.c.l.b16 %v261
    %v302 = vunpack.c.l.b16 %v262
    %v303 = vunpack.c.l.b16 %v263
    %v304 = vunpack.c.l.b16 %v264
    %v305 = vunpack.c.l.b16 %v265
    %v306 = vunpack.c.l.b16 %v266
    %v307 = vunpack.c.l.b16 %v267
    %v308 = vunpack.c.l.b16 %v268
    %v309 = vunpack.c.l.b16 %v269
    %v310 = vunpack.c.l.b16 %v270
    %v311 = vunpack.c.l.b16 %v271
    %v312 = vunpack.c.l.b16 %v272
    %v313 = vpack.c.b16 %v298, %v297
    %v314 = vpack.c.b16 %v300, %v299
    %v315 = vpack.c.b16 %v302, %v301
    %v316 = vpack.c.b16 %v304, %v303
    %v317 = vpack.c.b16 %v306, %v305
    %v318 = vpack.c.b16 %v308, %v307
    %v319 = vpack.c.b16 %v310, %v309
    %v320 = vpack.c.b16 %v312, %v311
    %329 = vmatprep.subr.bf16.mxu0 0
    %330 = vmatpush1.bf16.msra.mxu0 %v313
    %331 = vmatprep.subr.bf16.mxu0 0
    %332 = vmatpush1.bf16.msra.mxu0 %v314
    %333 = vmatprep.subr.bf16.mxu0 0
    %334 = vmatpush1.bf16.msra.mxu0 %v315
    %335 = vmatprep.subr.bf16.mxu0 0
    %336 = vmatpush1.bf16.msra.mxu0 %v316
    %337 = vmatprep.subr.bf16.mxu0 0
    %338 = vmatpush1.bf16.msra.mxu0 %v317
    %339 = vmatprep.subr.bf16.mxu0 0
    %340 = vmatpush1.bf16.msra.mxu0 %v318
    %341 = vmatprep.subr.bf16.mxu0 0
    %342 = vmatpush1.bf16.msra.mxu0 %v319
    %343 = vmatprep.subr.bf16.mxu0 0
    %344 = vmatpush1.bf16.msra.mxu0 %v320
    %345 = vmatprep.subr.bf16.mxu0 0
    %346 = vmatpush1.bf16.msra.mxu0 0
    %347 = vmatprep.subr.bf16.mxu0 0
    %348 = vmatpush1.bf16.msra.mxu0 0
    %349 = vmatprep.subr.bf16.mxu0 0
    %350 = vmatpush1.bf16.msra.mxu0 0
    %351 = vmatprep.subr.bf16.mxu0 0
    %352 = vmatpush1.bf16.msra.mxu0 0
    %353 = vmatprep.subr.bf16.mxu0 0
    %354 = vmatpush1.bf16.msra.mxu0 0
    %355 = vmatprep.subr.bf16.mxu0 0
    %356 = vmatpush1.bf16.msra.mxu0 0
    %357 = vmatprep.subr.bf16.mxu0 0
    %358 = vmatpush1.bf16.msra.mxu0 0
    %359 = vmatprep.subr.bf16.mxu0 0
    %360 = vmatpush1.bf16.msra.mxu0 0
    %361 = vmatprep.mubr.bf16.mxu0 0
    %362 = vmatmul.mubr.bf16.gmra.mrb[0].mxu0 %v255
    %v363 = vpop.f32.mrb[0].mxu0
    %v364 = vadd.f32 %v279, %v363
    %v365 = vpop.f32.mrb[0].mxu0
    %v366 = vpop.f32.mrb[0].mxu0
    %v367 = vadd.f32 %v279, %v366
    %v368 = vpop.f32.mrb[0].mxu0
    %369 = vdwg.mxu0
    %v370 = vpack.c.bf16 %v367, %v364
    %v372 = vunpack.c.l.b16 %v370
    %v373 = vunpack.c.h.b16 %v370
    %v374 = vpack.c.b16 %v372, %v372
    %v375 = vpack.c.b16 %v373, %v373
    %378 = vst [vmem:[#allocation8] sm:$0xf] %v374
    %379 = vst [vmem:[#allocation8 + $0x4] sm:$0xf] %v375
    // Predicated region
    $region34: #{tpu_custom_call.1} parent=1 // pred_check
      _
    $region35: #{tpu_custom_call.1} parent=1 // pred_check_branch
      %381 = sbr.rel (0) target = $region37
    $region36: #{tpu_custom_call.1} parent=1 // pred_region
      %s383 = ssub.s32 128, 128
      %384 = vsyncadd [#allocation4], %s383
      %s385 = sshll.u32 [#allocation8], 4
      %s386 = int_to_ptr.vmem [resolvable:$true] %s385
      %391 = dma.vmem_to_hbm [thread:$0]  %s386, 128, %s5, [#allocation4], 64, 64, 4
    $region37: #{tpu_custom_call.1} parent=1 // pred_fallthru
      _
    // Predicated region
    $region38: #{tpu_custom_call.1} parent=1 // pred_check
      _
    $region39: #{tpu_custom_call.1} parent=1 // pred_check_branch
      %393 = sbr.rel (0) target = $region41
    $region40: #{tpu_custom_call.1} parent=1 // pred_region
      %394 = dma.done [#allocation4], 128
    $region41: #{tpu_custom_call.1} parent=1 // pred_fallthru
      _
    %395 = vsyncpa [#allocation3], 1
    %396 = vsyncpa [#allocation6], 1
    %397 = vsyncpa [#allocation4], 1

</llo_original>
